<compile_context>
chip_gen: v6e
topology: v6e:2x2x1
jax: 0.10.0
libtpu: 0.0.40
codegen_flags: <defaults>
</compile_context>

<pallas_src>
import math

import jax
import jax.numpy as jnp
from jax.experimental import pallas as pl
from jax.experimental.pallas import tpu as pltpu

_INV_SQRT2 = 1.0 / math.sqrt(2.0)


def _ffn_kernel(x_ref, w1_ref, b1_ref, w2_ref, b2_ref, o_ref, acc_ref):
    # x_ref: (tm, dim)   w1_ref: (dim, th)  b1_ref: (1, th)
    # w2_ref: (th, dim)  b2_ref: (1, dim)   o_ref: (tm, dim)  acc_ref: (tm, dim) f32
    j = pl.program_id(1)

    # First linear (MXU, f32 accumulation) + bias, restricted to this hidden slab.
    h = jnp.dot(x_ref[...], w1_ref[...],
                preferred_element_type=jnp.float32) + b1_ref[...]

    # Exact (erf-based) GELU in f32 — matches torch.nn.GELU() default.
    h = 0.5 * h * (1.0 + jax.lax.erf(h * _INV_SQRT2))

    # Dropout(p=0.0) / eval mode is the identity -> no-op.

    # Second linear: this hidden slab's contribution to the (tm, dim) output tile.
    contrib = jnp.dot(h.astype(w2_ref.dtype), w2_ref[...],
                      preferred_element_type=jnp.float32)

    @pl.when(j == 0)
    def _():
        # Fold b2 into the accumulator init: no zero-fill and no epilogue bias add.
        acc_ref[...] = contrib + b2_ref[...]

    @pl.when(j != 0)
    def _():
        acc_ref[...] += contrib

    @pl.when(j == pl.num_programs(1) - 1)
    def _():
        # For real model dims (multiples of 128) this store is lane-dense; tiny demo dims (<128)
        # fall back to masked stores, which is fine at that scale.
        o_ref[...] = acc_ref[...].astype(o_ref.dtype)


def _round_up(x, m):
    return ((x + m - 1) // m) * m


def _round_down(x, m):
    return max(m, (x // m) * m)


def _pick_hidden_tile(hidden, preferred):
    # The hidden axis is a reduction axis -> the tile must divide it exactly.
    for c in (preferred, 512, 256, 128):
        if c <= hidden and hidden % c == 0:
            return c
    return hidden  # small / odd hidden: full-extent block is legal


def _vmem_capacity_bytes():
    try:
        cap = getattr(pltpu.get_tpu_info(), "vmem_capacity_bytes", None)
        if cap:
            return int(cap)
    except Exception:
        pass
    return 64 * 1024 * 1024  # conservative (v7x-sized) fallback


def _vmem_estimate(tm, th, dim, in_itemsize, out_itemsize):
    # Double-buffered inputs/outputs + resident f32 accumulator.
    return (2 * tm * dim * in_itemsize        # x row-tile
            + 2 * dim * th * in_itemsize      # W1 hidden-slab
            + 2 * th * dim * in_itemsize      # W2 hidden-slab
            + 2 * (th + dim) * 4              # f32 biases
            + 2 * tm * dim * out_itemsize     # output tile
            + tm * dim * 4)                   # f32 accumulator scratch


def feed_forward(x, w1, b1, w2, b2, *, tm=None, th=None, compute_dtype="auto"):
    """x: (batch, seq, dim). w1: (dim, hidden), b1: (hidden,), w2: (hidden, dim), b2: (dim,).

    compute_dtype:
      "auto" (default) -> bf16 MXU operands when x is f32 (accumulation/bias/GELU stay in f32),
      None             -> keep input dtypes (exact nn.Linear / nn.GELU parity for f32 inputs),
      explicit dtype   -> cast matmul operands to that dtype.
    The output always keeps x's original dtype.
    """
    batch, seq, dim = x.shape
    hidden = w1.shape[1]
    M = batch * seq
    out_dtype = x.dtype

    if compute_dtype == "auto":
        compute_dtype = jnp.bfloat16 if x.dtype == jnp.float32 else None
    if compute_dtype is not None:
        x = x.astype(compute_dtype)
        w1 = w1.astype(compute_dtype)
        w2 = w2.astype(compute_dtype)

    x2d = x.reshape(M, dim)
    b1_2d = b1.astype(jnp.float32).reshape(1, hidden)
    b2_2d = b2.astype(jnp.float32).reshape(1, dim)

    in_itemsize = jnp.dtype(x2d.dtype).itemsize
    out_itemsize = jnp.dtype(out_dtype).itemsize

    # ---- hardware-aware tile / VMEM-budget selection -------------------------------------
    vmem_cap = _vmem_capacity_bytes()
    vmem_budget = int(vmem_cap * 0.70)            # leave headroom for Mosaic internals
    small_vmem = vmem_cap < 100 * 1024 * 1024     # v7x-class: 64 MiB VMEM, 2 TensorCores

    sub = 16 if in_itemsize == 2 else 8           # sublane-packing granularity

    if th is None:
        th = _pick_hidden_tile(hidden, 256 if small_vmem else 512)
    assert hidden % th == 0, "hidden tile must divide hidden (reduction axis)"

    if tm is None:
        # tm is the arithmetic-intensity knob: W1/W2 are re-streamed ceil(M/tm) times from HBM.
        tm = 512 if small_vmem else 1024
    tm = min(tm, _round_up(M, sub))
    if small_vmem and M > sub:
        # Two TensorCores shard the "parallel" row axis: keep >= 2 balanced row tiles.
        tm = min(tm, _round_up(pl.cdiv(M, 2), sub))
    tm = _round_down(tm, 256) if tm >= 256 else _round_down(tm, sub)

    # Shrink tiles (tm first, then th) until the double-buffered working set fits the budget.
    while tm > 256 and _vmem_estimate(tm, th, dim, in_itemsize, out_itemsize) > vmem_budget:
        tm = max(256, tm // 2)
    while (th > 128 and th % 2 == 0 and hidden % (th // 2) == 0
           and _vmem_estimate(tm, th, dim, in_itemsize, out_itemsize) > vmem_budget):
        th //= 2

    grid = (pl.cdiv(M, tm), hidden // th)

    est = _vmem_estimate(tm, th, dim, in_itemsize, out_itemsize)
    headroom = min(16 * 1024 * 1024, vmem_cap // 4)
    vmem_limit = int(min(vmem_cap - headroom,
                         max(32 * 1024 * 1024, est + est // 2)))

    cost = pl.CostEstimate(
        flops=4 * M * dim * hidden,               # two matmuls, 2*M*dim*hidden FLOPs each
        transcendentals=M * hidden,               # erf on the hidden activations
        bytes_accessed=(x2d.size * in_itemsize
                        + grid[0] * (w1.size + w2.size) * in_itemsize  # weights re-streamed/row-tile
                        + (b1.size + b2.size) * 4
                        + M * dim * out_itemsize),
    )

    out2d = pl.pallas_call(
        _ffn_kernel,
        out_shape=jax.ShapeDtypeStruct((M, dim), out_dtype),
        grid_spec=pltpu.PrefetchScalarGridSpec(
            num_scalar_prefetch=0,
            grid=grid,
            in_specs=[
                pl.BlockSpec((tm, dim), lambda i, j: (i, 0)),   # x row-tile (resident across j)
                pl.BlockSpec((dim, th), lambda i, j: (0, j)),   # W1 hidden-slab
                pl.BlockSpec((1, th), lambda i, j: (0, j)),     # b1 slab
                pl.BlockSpec((th, dim), lambda i, j: (j, 0)),   # W2 hidden-slab
                pl.BlockSpec((1, dim), lambda i, j: (0, 0)),    # b2 (resident)
            ],
            out_specs=pl.BlockSpec((tm, dim), lambda i, j: (i, 0)),
            scratch_shapes=[pltpu.VMEM((tm, dim), jnp.float32)],
        ),
        compiler_params=pltpu.CompilerParams(
            dimension_semantics=("parallel", "arbitrary"),
            vmem_limit_bytes=vmem_limit,
        ),
        cost_estimate=cost,
    )(x2d, w1, b1_2d, w2, b2_2d)

    return out2d.reshape(batch, seq, dim)


def _reference(x, w1, b1, w2, b2):
    h = jnp.einsum("bsd,dh->bsh", x, w1) + b1
    h = 0.5 * h * (1.0 + jax.lax.erf(h / math.sqrt(2.0)))
    return jnp.einsum("bsh,hd->bsd", h, w2) + b2


if __name__ == "__main__":
    # Small, forward-implied shapes: tokens of width `dim`, MLP hidden `hidden_dim`.
    batch, seq, dim, hidden_dim = 2, 8, 32, 64

    key = jax.random.PRNGKey(0)
    kx, kw1, kb1, kw2, kb2 = jax.random.split(key, 5)

    x = jax.random.normal(kx, (batch, seq, dim), dtype=jnp.float32)

    # Deterministic param init (PyTorch nn.Linear-style uniform bounds), stored as (in, out).
    bound1 = 1.0 / math.sqrt(dim)
    w1 = jax.random.uniform(kw1, (dim, hidden_dim), minval=-bound1, maxval=bound1,
                            dtype=jnp.float32)
    b1 = jax.random.uniform(kb1, (hidden_dim,), minval=-bound1, maxval=bound1,
                            dtype=jnp.float32)
    bound2 = 1.0 / math.sqrt(hidden_dim)
    w2 = jax.random.uniform(kw2, (hidden_dim, dim), minval=-bound2, maxval=bound2,
                            dtype=jnp.float32)
    b2 = jax.random.uniform(kb2, (dim,), minval=-bound2, maxval=bound2,
                            dtype=jnp.float32)

    ref = _reference(x, w1, b1, w2, b2)

    # Exact-parity opt-in: f32 operands, erf GELU (matches torch.nn.GELU / nn.Linear numerics).
    out_f32 = jax.block_until_ready(feed_forward(x, w1, b1, w2, b2, compute_dtype=None))
    assert out_f32.shape == (batch, seq, dim)
    assert jnp.allclose(out_f32, ref, atol=1e-5, rtol=1e-5), "f32 mismatch vs reference"

    # Default fast path: bf16 MXU operands with f32 accumulation (looser tolerance vs f32 ref).
    out_fast = jax.block_until_ready(feed_forward(x, w1, b1, w2, b2))
    assert out_fast.shape == (batch, seq, dim)
    assert out_fast.dtype == x.dtype
    assert jnp.allclose(out_fast, ref, atol=5e-2, rtol=5e-2), "bf16 mismatch vs reference"

    print("KERNEL_OK")
</pallas_src>

<mosaic_0001>
module attributes {stable_mosaic.version = 11 : i64} {
  func.func @_ffn_kernel(%arg0: i32, %arg1: i32, %arg2: memref<8x32xf32, #tpu.memory_space<vmem>>, %arg3: memref<32x64xf32, #tpu.memory_space<vmem>>, %arg4: memref<1x64xf32, #tpu.memory_space<vmem>>, %arg5: memref<64x32xf32, #tpu.memory_space<vmem>>, %arg6: memref<1x32xf32, #tpu.memory_space<vmem>>, %arg7: memref<8x32xf32, #tpu.memory_space<vmem>>, %arg8: memref<8x32xf32, #tpu.memory_space<vmem>>) attributes {dimension_semantics = [#tpu.dimension_semantics<parallel>, #tpu.dimension_semantics<arbitrary>], iteration_bounds = array<i64: 2, 1>, scalar_prefetch = 0 : i64, scratch_operands = 1 : i64, tpu.core_type = #tpu.core_type<tc>, window_params = [{transform_indices = @transform_0, window_bounds = array<i64: 8, 32>}, {transform_indices = @transform_1, window_bounds = array<i64: 32, 64>}, {transform_indices = @transform_2, window_bounds = array<i64: 1, 64>}, {transform_indices = @transform_3, window_bounds = array<i64: 64, 32>}, {pipeline_mode = #tpu.pipeline_mode<synchronous>, transform_indices = @transform_4, window_bounds = array<i64: 1, 32>}, {transform_indices = @transform_5, window_bounds = array<i64: 8, 32>}]} {
    %c0 = arith.constant 0 : index
    %c0_0 = arith.constant 0 : index
    %0 = vector.load %arg2[%c0, %c0_0] : memref<8x32xf32, #tpu.memory_space<vmem>>, vector<8x32xf32>
    %c0_1 = arith.constant 0 : index
    %c0_2 = arith.constant 0 : index
    %1 = vector.load %arg3[%c0_1, %c0_2] : memref<32x64xf32, #tpu.memory_space<vmem>>, vector<32x64xf32>
    %cst = arith.constant dense<0.000000e+00> : vector<8x64xf32>
    %2 = tpu.matmul %0, %1, %cst {dimension_numbers = #tpu.dot_dimension_numbers<[1], [0], [0], [1], [0, 0, 1, 1], [], []>} : vector<8x32xf32>, vector<32x64xf32>, vector<8x64xf32> -> vector<8x64xf32>
    %c0_3 = arith.constant 0 : index
    %c0_4 = arith.constant 0 : index
    %3 = vector.load %arg4[%c0_3, %c0_4] : memref<1x64xf32, #tpu.memory_space<vmem>>, vector<1x64xf32>
    %4 = vector.broadcast %3 : vector<1x64xf32> to vector<8x64xf32>
    %5 = arith.addf %2, %4 : vector<8x64xf32>
    %cst_5 = arith.constant 5.000000e-01 : f32
    %6 = vector.broadcast %cst_5 : f32 to vector<8x64xf32>
    %7 = arith.mulf %6, %5 : vector<8x64xf32>
    %cst_6 = arith.constant 0.707106769 : f32
    %8 = vector.broadcast %cst_6 : f32 to vector<8x64xf32>
    %9 = arith.mulf %5, %8 : vector<8x64xf32>
    %10 = math.erf %9 : vector<8x64xf32>
    %cst_7 = arith.constant 1.000000e+00 : f32
    %11 = vector.broadcast %cst_7 : f32 to vector<8x64xf32>
    %12 = arith.addf %11, %10 : vector<8x64xf32>
    %13 = arith.mulf %7, %12 : vector<8x64xf32>
    %c0_8 = arith.constant 0 : index
    %c0_9 = arith.constant 0 : index
    %14 = vector.load %arg5[%c0_8, %c0_9] : memref<64x32xf32, #tpu.memory_space<vmem>>, vector<64x32xf32>
    %cst_10 = arith.constant dense<0.000000e+00> : vector<8x32xf32>
    %15 = tpu.matmul %13, %14, %cst_10 {dimension_numbers = #tpu.dot_dimension_numbers<[1], [0], [0], [1], [0, 0, 1, 1], [], []>} : vector<8x64xf32>, vector<64x32xf32>, vector<8x32xf32> -> vector<8x32xf32>
    %c0_i32 = arith.constant 0 : i32
    %16 = arith.cmpi eq, %arg1, %c0_i32 : i32
    %17 = arith.extui %16 : i1 to i32
    %c0_i32_11 = arith.constant 0 : i32
    %18 = arith.cmpi ne, %17, %c0_i32_11 : i32
    scf.if %18 {
      %c0_16 = arith.constant 0 : index
      %c0_17 = arith.constant 0 : index
      %25 = vector.load %arg6[%c0_16, %c0_17] : memref<1x32xf32, #tpu.memory_space<vmem>>, vector<1x32xf32>
      %26 = vector.broadcast %25 : vector<1x32xf32> to vector<8x32xf32>
      %27 = arith.addf %15, %26 : vector<8x32xf32>
      %c0_18 = arith.constant 0 : index
      %c0_19 = arith.constant 0 : index
      %28 = vector.load %arg8[%c0_18, %c0_19] : memref<8x32xf32, #tpu.memory_space<vmem>>, vector<8x32xf32>
      tpu.vector_store %arg8[%c0_18, %c0_19], %27 {strides = array<i32>} : memref<8x32xf32, #tpu.memory_space<vmem>>, vector<8x32xf32>,
    } else {
    }
    %c0_i32_12 = arith.constant 0 : i32
    %19 = arith.cmpi ne, %arg1, %c0_i32_12 : i32
    %20 = arith.extui %19 : i1 to i32
    %c0_i32_13 = arith.constant 0 : i32
    %21 = arith.cmpi ne, %20, %c0_i32_13 : i32
    scf.if %21 {
      %c0_16 = arith.constant 0 : index
      %c0_17 = arith.constant 0 : index
      %25 = vector.load %arg8[%c0_16, %c0_17] : memref<8x32xf32, #tpu.memory_space<vmem>>, vector<8x32xf32>
      %26 = arith.addf %25, %15 : vector<8x32xf32>
      %c0_18 = arith.constant 0 : index
      %c0_19 = arith.constant 0 : index
      %27 = vector.load %arg8[%c0_18, %c0_19] : memref<8x32xf32, #tpu.memory_space<vmem>>, vector<8x32xf32>
      tpu.vector_store %arg8[%c0_18, %c0_19], %26 {strides = array<i32>} : memref<8x32xf32, #tpu.memory_space<vmem>>, vector<8x32xf32>,
    } else {
    }
    %c0_i32_14 = arith.constant 0 : i32
    %22 = arith.cmpi eq, %arg1, %c0_i32_14 : i32
    %23 = arith.extui %22 : i1 to i32
    %c0_i32_15 = arith.constant 0 : i32
    %24 = arith.cmpi ne, %23, %c0_i32_15 : i32
    scf.if %24 {
      %c0_16 = arith.constant 0 : index
      %c0_17 = arith.constant 0 : index
      %25 = vector.load %arg8[%c0_16, %c0_17] : memref<8x32xf32, #tpu.memory_space<vmem>>, vector<8x32xf32>
      %c0_18 = arith.constant 0 : index
      %c0_19 = arith.constant 0 : index
      %26 = vector.load %arg7[%c0_18, %c0_19] : memref<8x32xf32, #tpu.memory_space<vmem>>, vector<8x32xf32>
      tpu.vector_store %arg7[%c0_18, %c0_19], %25 {strides = array<i32>} : memref<8x32xf32, #tpu.memory_space<vmem>>, vector<8x32xf32>,
    } else {
    }
    return
  }
  func.func @transform_0(%arg0: i32, %arg1: i32) -> (i32, i32) {
    %c0_i32 = arith.constant 0 : i32
    %c0_i32_0 = arith.constant 0 : i32
    return %arg0, %c0_i32 : i32, i32
  }
  func.func @transform_1(%arg0: i32, %arg1: i32) -> (i32, i32) {
    %c0_i32 = arith.constant 0 : i32
    %c0_i32_0 = arith.constant 0 : i32
    return %c0_i32, %arg1 : i32, i32
  }
  func.func @transform_2(%arg0: i32, %arg1: i32) -> (i32, i32) {
    %c0_i32 = arith.constant 0 : i32
    %c0_i32_0 = arith.constant 0 : i32
    return %c0_i32, %arg1 : i32, i32
  }
  func.func @transform_3(%arg0: i32, %arg1: i32) -> (i32, i32) {
    %c0_i32 = arith.constant 0 : i32
    %c0_i32_0 = arith.constant 0 : i32
    return %arg1, %c0_i32 : i32, i32
  }
  func.func @transform_4(%arg0: i32, %arg1: i32) -> (i32, i32) {
    %c0_i32 = arith.constant 0 : i32
    %c0_i32_0 = arith.constant 0 : i32
    %c0_i32_1 = arith.constant 0 : i32
    return %c0_i32, %c0_i32_0 : i32, i32
  }
  func.func @transform_5(%arg0: i32, %arg1: i32) -> (i32, i32) {
    %c0_i32 = arith.constant 0 : i32
    %c0_i32_0 = arith.constant 0 : i32
    return %arg0, %c0_i32 : i32, i32
  }
}

</mosaic_0001>

<llo_original>
// kernel: tpu_custom_call.1
$region0: #{tpu_custom_call.1}
  #allocation0 [shape = 'u32[]', space=smem, size = 0x4, offset = 0x4, fixed_abs, tag = 'smem constant byte address 0x4 - core index']
  #allocation1 [shape = 'u32[144,128]{1,0:T(1,128)}', space=vmem, size = 0x12000, scoped, tag = 'internal scratch']
  #allocation2 [shape = 'f32[8,32]{1,0:T(8,128)}', space=vmem, size = 0x1000, scoped, tag = 'scratch operand']
  %s0 = inlined_call_operand.vmem [shape: f32[16,32], index: 0, kind: input, shape index: {}]
  %s1 = inlined_call_operand.vmem [shape: f32[32,64], index: 1, kind: input, shape index: {}]
  %s2 = inlined_call_operand.vmem [shape: f32[1,64], index: 2, kind: input, shape index: {}]
  %s3 = inlined_call_operand.vmem [shape: f32[64,32], index: 3, kind: input, shape index: {}]
  %s4 = inlined_call_operand.vmem [shape: f32[1,32], index: 4, kind: input, shape index: {}]
  %s5 = inlined_call_operand.hbm [shape: f32[16,32], index: 5, kind: output, shape index: {}]
  %s6 = sld [smem:[#allocation0]]
  $region65: #{tpu_custom_call.1} parent=0
    _
  %s8 = ssub.s32 1, %s6
  %s9 = scalar_select 0, %s8, %s6
  $region1: #{tpu_custom_call.1} parent=0
    #allocation3 [shape = 'u8[8192]{0}', space=vmem, size = 0x2000, scoped, tag = 'output window, operand 0']
    #allocation4 [shape = 's32[2]{0}', space=sflag, size = 0x8, scoped, tag = 'scoped memory for tpu_custom_call.1']
    %10 = vsyncpa [#allocation4], 0
    %s11 = scalar_lea.sflag [#allocation4], 1
    %12 = vsyncpa %s11, 0
    loop: start=0, step=1, limit=4
    $region2: #{tpu_custom_call.1} parent=1 // loop_pre_header
      _
    $region3: #{tpu_custom_call.1} parent=1 // loop_header
      %s14 = sphi 0, %s18
      %p15 = scmp.ge.s32.totalorder %s14, 4
      %s21 = sphi 0, %s33
      %s22 = sphi 0, %s29
      %s23 = sphi 0, %s21
      %s24 = sphi 0, %s22
      %s25 = sphi 0, %s23
      %s26 = sphi 0, %s24
      %s36 = sphi 0, %s38
      %s39 = sphi 0, %s36
      %s40 = sphi 0, %s39
      %s56 = sphi 0, %s40
      %s62 = sphi 0, %s64
      %s65 = sphi 0, %s62
      %s66 = sphi 0, %s65
      %s82 = sphi 0, %s66
      %s88 = sphi 0, %s90
      %s91 = sphi 0, %s88
      %s92 = sphi 0, %s91
      %s108 = sphi 0, %s92
      %s114 = sphi 0, %s116
      %s117 = sphi 0, %s114
      %s118 = sphi 0, %s117
      %s134 = sphi 0, %s118
      %s138 = sphi 0, %s138
      %s140 = sphi 0, %s138
      %s141 = sphi 0, %s140
      %s155 = sphi 0, %s141
      %s161 = sphi 0, %s163
      %s164 = sphi 0, %s161
      %s165 = sphi 0, %s164
      %s181 = sphi 0, %s165
    $region4: #{tpu_custom_call.1} parent=1 // loop_header_branch
      %17 = sbr.rel (%p15) target = $region8
    $region5: #{tpu_custom_call.1} parent=1 // loop_body
      %s19 = ssub.s32 %s14, 1
      %s20 = ssub.s32 %s14, 2
      %s27 = sadd.s32 1, %s22
      %p28 = scmp.ge.s32.totalorder %s27, 1
      %s29 = scalar_select %p28, 0, %s27
      %s30 = sadd.s32 1, %s21
      %s31 = scalar_select %p28, %s30, %s21
      %p32 = scmp.ge.s32.totalorder %s31, 2
      %s33 = scalar_select %p32, 0, %s31
      %s34 = ssub.s32 %s21, %s33
      %p35 = scmp.eq.s32.totalorder %s34, 0
      %s37 = sadd.s32 %s36, 1
      %s38 = scalar_select %p35, %s36, %s37
      %p41 = pneg %p35
      %p42 = scmp.eq.s32.totalorder %s14, 1
      %p43 = por %p41, %p42
      %p44 = scmp.ne.s32.totalorder %s36, %s39
      %p45 = scmp.eq.s32.totalorder %s14, 0
      %p46 = por %p44, %p45
      %p47 = scmp.ne.s32.totalorder %s36, %s39
      %p48 = scmp.eq.s32.totalorder %s19, 1
      %p49 = por %p47, %p48
      %p50 = scmp.ne.s32.totalorder %s39, %s40
      %p51 = scmp.eq.s32.totalorder %s19, 0
      %p52 = por %p50, %p51
      %p53 = scmp.ne.s32.totalorder %s39, %s40
      %p54 = scmp.eq.s32.totalorder %s20, 1
      %p55 = por %p53, %p54
      %p57 = scmp.ne.s32.totalorder %s40, %s56
      %p58 = scmp.eq.s32.totalorder %s20, 0
      %p59 = por %p57, %p58
      %s60 = ssub.s32 %s22, %s29
      %p61 = scmp.eq.s32.totalorder %s60, 0
      %s63 = sadd.s32 %s62, 1
      %s64 = scalar_select %p61, %s62, %s63
      %p67 = pneg %p61
      %p68 = scmp.eq.s32.totalorder %s14, 1
      %p69 = por %p67, %p68
      %p70 = scmp.ne.s32.totalorder %s62, %s65
      %p71 = scmp.eq.s32.totalorder %s14, 0
      %p72 = por %p70, %p71
      %p73 = scmp.ne.s32.totalorder %s62, %s65
      %p74 = scmp.eq.s32.totalorder %s19, 1
      %p75 = por %p73, %p74
      %p76 = scmp.ne.s32.totalorder %s65, %s66
      %p77 = scmp.eq.s32.totalorder %s19, 0
      %p78 = por %p76, %p77
      %p79 = scmp.ne.s32.totalorder %s65, %s66
      %p80 = scmp.eq.s32.totalorder %s20, 1
      %p81 = por %p79, %p80
      %p83 = scmp.ne.s32.totalorder %s66, %s82
      %p84 = scmp.eq.s32.totalorder %s20, 0
      %p85 = por %p83, %p84
      %s86 = ssub.s32 %s22, %s29
      %p87 = scmp.eq.s32.totalorder %s86, 0
      %s89 = sadd.s32 %s88, 1
      %s90 = scalar_select %p87, %s88, %s89
      %p93 = pneg %p87
      %p94 = scmp.eq.s32.totalorder %s14, 1
      %p95 = por %p93, %p94
      %p96 = scmp.ne.s32.totalorder %s88, %s91
      %p97 = scmp.eq.s32.totalorder %s14, 0
      %p98 = por %p96, %p97
      %p99 = scmp.ne.s32.totalorder %s88, %s91
      %p100 = scmp.eq.s32.totalorder %s19, 1
      %p101 = por %p99, %p100
      %p102 = scmp.ne.s32.totalorder %s91, %s92
      %p103 = scmp.eq.s32.totalorder %s19, 0
      %p104 = por %p102, %p103
      %p105 = scmp.ne.s32.totalorder %s91, %s92
      %p106 = scmp.eq.s32.totalorder %s20, 1
      %p107 = por %p105, %p106
      %p109 = scmp.ne.s32.totalorder %s92, %s108
      %p110 = scmp.eq.s32.totalorder %s20, 0
      %p111 = por %p109, %p110
      %s112 = ssub.s32 %s22, %s29
      %p113 = scmp.eq.s32.totalorder %s112, 0
      %s115 = sadd.s32 %s114, 1
      %s116 = scalar_select %p113, %s114, %s115
      %p119 = pneg %p113
      %p120 = scmp.eq.s32.totalorder %s14, 1
      %p121 = por %p119, %p120
      %p122 = scmp.ne.s32.totalorder %s114, %s117
      %p123 = scmp.eq.s32.totalorder %s14, 0
      %p124 = por %p122, %p123
      %p125 = scmp.ne.s32.totalorder %s114, %s117
      %p126 = scmp.eq.s32.totalorder %s19, 1
      %p127 = por %p125, %p126
      %p128 = scmp.ne.s32.totalorder %s117, %s118
      %p129 = scmp.eq.s32.totalorder %s19, 0
      %p130 = por %p128, %p129
      %p131 = scmp.ne.s32.totalorder %s117, %s118
      %p132 = scmp.eq.s32.totalorder %s20, 1
      %p133 = por %p131, %p132
      %p135 = scmp.ne.s32.totalorder %s118, %s134
      %p136 = scmp.eq.s32.totalorder %s20, 0
      %p137 = por %p135, %p136
      %s139 = sadd.s32 %s138, 1
      %p142 = scmp.eq.s32.totalorder %s14, 1
      %p143 = scmp.ne.s32.totalorder %s138, %s140
      %p144 = scmp.eq.s32.totalorder %s14, 0
      %p145 = por %p143, %p144
      %p146 = scmp.ne.s32.totalorder %s138, %s140
      %p147 = scmp.eq.s32.totalorder %s19, 1
      %p148 = por %p146, %p147
      %p149 = scmp.ne.s32.totalorder %s140, %s141
      %p150 = scmp.eq.s32.totalorder %s19, 0
      %p151 = por %p149, %p150
      %p152 = scmp.ne.s32.totalorder %s140, %s141
      %p153 = scmp.eq.s32.totalorder %s20, 1
      %p154 = por %p152, %p153
      %p156 = scmp.ne.s32.totalorder %s141, %s155
      %p157 = scmp.eq.s32.totalorder %s20, 0
      %p158 = por %p156, %p157
      %s159 = ssub.s32 %s21, %s33
      %p160 = scmp.eq.s32.totalorder %s159, 0
      %s162 = sadd.s32 %s161, 1
      %s163 = scalar_select %p160, %s161, %s162
      %p166 = pneg %p160
      %p167 = scmp.eq.s32.totalorder %s14, 1
      %p168 = por %p166, %p167
      %p169 = scmp.ne.s32.totalorder %s161, %s164
      %p170 = scmp.eq.s32.totalorder %s14, 0
      %p171 = por %p169, %p170
      %p172 = scmp.ne.s32.totalorder %s161, %s164
      %p173 = scmp.eq.s32.totalorder %s19, 1
      %p174 = por %p172, %p173
      %p175 = scmp.ne.s32.totalorder %s164, %s165
      %p176 = scmp.eq.s32.totalorder %s19, 0
      %p177 = por %p175, %p176
      %p178 = scmp.ne.s32.totalorder %s164, %s165
      %p179 = scmp.eq.s32.totalorder %s20, 1
      %p180 = por %p178, %p179
      %p182 = scmp.ne.s32.totalorder %s165, %s181
      %p183 = scmp.eq.s32.totalorder %s20, 0
      %p184 = por %p182, %p183
      %p185 = scmp.le.s32.totalorder 1, %s14
      %p186 = scmp.lt.s32.totalorder %s14, 3
      %p187 = pnand %p185, %p186
      %p188 = pneg %p187
      // Predicated region
      $region9: #{tpu_custom_call.1} parent=5 // pred_check
        _
      $region10: #{tpu_custom_call.1} parent=5 // pred_check_branch
        %190 = sbr.rel (%p187) target = $region12
      $region11: #{tpu_custom_call.1} parent=5 // pred_region
        %s191 = ssub.s32 %s14, 1
        // Predicated region
        $region13: #{tpu_custom_call.1} parent=11 // pred_check
          %p192 = pneg %p78
        $region14: #{tpu_custom_call.1} parent=11 // pred_check_branch
          %194 = sbr.rel (%p192) target = $region16
        $region15: #{tpu_custom_call.1} parent=11 // pred_region
          %p195 = scmp.lt.s32.totalorder %s24, 0
          %s196 = scalar_select %p195, %s24, 0
          %s197 = smul.addr %s196, 8
          %s198 = scalar_lea.vmem %s1, %s197
        $region16: #{tpu_custom_call.1} parent=11 // pred_fallthru
          _
        // Predicated region
        $region17: #{tpu_custom_call.1} parent=11 // pred_check
          %p199 = pneg %p104
        $region18: #{tpu_custom_call.1} parent=11 // pred_check_branch
          %201 = sbr.rel (%p199) target = $region20
        $region19: #{tpu_custom_call.1} parent=11 // pred_region
          %p202 = scmp.lt.s32.totalorder %s24, 0
          %s203 = scalar_select %p202, %s24, 0
          %s204 = scalar_lea.vmem %s2, %s203
        $region20: #{tpu_custom_call.1} parent=11 // pred_fallthru
          _
        // Predicated region
        $region21: #{tpu_custom_call.1} parent=11 // pred_check
          %p205 = pneg %p130
        $region22: #{tpu_custom_call.1} parent=11 // pred_check_branch
          %207 = sbr.rel (%p205) target = $region24
        $region23: #{tpu_custom_call.1} parent=11 // pred_region
          %s208 = smul.u32 8, %s24
          %p209 = scmp.lt.s32.totalorder %s208, 7
          %s210 = scalar_select %p209, %s208, 7
          %s211 = smul.addr %s210, 8
          %s212 = scalar_lea.vmem %s3, %s211
          %s213 = smul.u32 8, %s24
        $region24: #{tpu_custom_call.1} parent=11 // pred_fallthru
          _
        // Predicated region
        $region25: #{tpu_custom_call.1} parent=11 // pred_check
          %p214 = pneg %p151
        $region26: #{tpu_custom_call.1} parent=11 // pred_check_branch
          %216 = sbr.rel (%p214) target = $region28
        $region27: #{tpu_custom_call.1} parent=11 // pred_region
          _
        $region28: #{tpu_custom_call.1} parent=11 // pred_fallthru
          _
      $region12: #{tpu_custom_call.1} parent=5 // pred_fallthru
        _
      %p217 = scmp.lt.s32.totalorder %s14, 2
      // Predicated region
      $region29: #{tpu_custom_call.1} parent=5 // pred_check
        %p218 = pneg %p217
      $region30: #{tpu_custom_call.1} parent=5 // pred_check_branch
        %220 = sbr.rel (%p218) target = $region32
      $region31: #{tpu_custom_call.1} parent=5 // pred_region
        // Predicated region
        $region33: #{tpu_custom_call.1} parent=31 // pred_check
          %p221 = pneg %p46
        $region34: #{tpu_custom_call.1} parent=31 // pred_check_branch
          %223 = sbr.rel (%p221) target = $region36
        $region35: #{tpu_custom_call.1} parent=31 // pred_region
          %p224 = scmp.lt.s32.totalorder %s21, 1
          %s225 = scalar_select %p224, %s21, 1
          %s226 = smul.addr %s225, 8
          %s227 = scalar_lea.vmem %s0, %s226
        $region36: #{tpu_custom_call.1} parent=31 // pred_fallthru
          _
      $region32: #{tpu_custom_call.1} parent=5 // pred_fallthru
        _
      %p228 = scmp.le.s32.totalorder 1, %s14
      %p229 = scmp.lt.s32.totalorder %s14, 3
      %p230 = pnand %p228, %p229
      %p231 = pneg %p230
      // Predicated region
      $region37: #{tpu_custom_call.1} parent=5 // pred_check
        _
      $region38: #{tpu_custom_call.1} parent=5 // pred_check_branch
        %233 = sbr.rel (%p230) target = $region40
      $region39: #{tpu_custom_call.1} parent=5 // pred_region
        %s234 = ssub.s32 %s14, 1
        %p235 = scmp.lt.s32.totalorder %s23, 1
        %s236 = scalar_select %p235, %s23, 1
        %s237 = smul.addr %s236, 8
        %s238 = scalar_lea.vmem %s0, %s237
        %p239 = pneg %p52
        %p240 = pneg %p49
        %p241 = scmp.lt.s32.totalorder %s24, 0
        %s242 = scalar_select %p241, %s24, 0
        %s243 = smul.addr %s242, 8
        %s244 = scalar_lea.vmem %s1, %s243
        %p245 = pneg %p78
        %p246 = pneg %p75
        %p247 = scmp.lt.s32.totalorder %s24, 0
        %s248 = scalar_select %p247, %s24, 0
        %s249 = scalar_lea.vmem %s2, %s248
        %p250 = pneg %p104
        %p251 = pneg %p101
        %s252 = smul.u32 8, %s24
        %p253 = scmp.lt.s32.totalorder %s252, 7
        %s254 = scalar_select %p253, %s252, 7
        %s255 = smul.addr %s254, 8
        %s256 = scalar_lea.vmem %s3, %s255
        %p257 = pneg %p130
        %p258 = pneg %p127
        %p259 = pneg %p151
        %p260 = pneg %p148
        %p261 = pneg %p177
        %p262 = pneg %p174
        %s263 = sand.u32 %s164, 1
        %s264 = scalar_lea.sflag [#allocation4], %s263
        %s265 = sand.u32 %s164, 1
        %s266 = smul.addr %s265, 8
        %s267 = scalar_lea.vmem [#allocation3], %s266
        %p268 = scmp.lt.s32.totalorder %s23, 1
        %s269 = scalar_select %p268, %s23, 1
        %s270 = smul.addr %s269, 8
        %s271 = scalar_lea.vmem %s0, %s270
        %p272 = scmp.lt.s32.totalorder %s24, 0
        %s273 = scalar_select %p272, %s24, 0
        %s274 = smul.addr %s273, 8
        %s275 = scalar_lea.vmem %s1, %s274
        %p276 = scmp.lt.s32.totalorder %s24, 0
        %s277 = scalar_select %p276, %s24, 0
        %s278 = scalar_lea.vmem %s2, %s277
        %s279 = smul.u32 8, %s24
        %p280 = scmp.lt.s32.totalorder %s279, 7
        %s281 = scalar_select %p280, %s279, 7
        %s282 = smul.addr %s281, 8
        %s283 = scalar_lea.vmem %s3, %s282
        %s284 = smul.u32 8, %s24
        %v285 = vld [vmem:[%s271] sm:$0xff]
        %v286 = vld [vmem:[%s275] sm:$0xff]
        %v287 = vld [vmem:[%s275 + $0x8] sm:$0xff]
        %v288 = vld [vmem:[%s275 + $0x10] sm:$0xff]
        %v289 = vld [vmem:[%s275 + $0x18] sm:$0xff]
        %v290 = vld [vmem:[%s278] sm:$0x1]
        %v292 = vlaneseq
        %v293 = vshrl.u32 %v292, 7
        %v294 = vsub.s32 0, %v293
        %v295 = vrot.slane %v290, %v294
        %vm297 = vcmask 261120
        %v299 = vsel %vm297, %v285, 0
        %301 = vmatprep.subr.mxu0 0.0
        %302 = vmatpush1.msra.mxu0 0.0
        %303 = vmatprep.subr.mxu0 0.0
        %304 = vmatpush1.msra.mxu0 0.0
        %305 = vmatprep.subr.mxu0 0.0
        %306 = vmatpush1.msra.mxu0 0.0
        %307 = vmatprep.subr.mxu0 0.0
        %308 = vmatpush1.msra.mxu0 0.0
        %309 = vmatprep.subr.mxu0 0.0
        %310 = vmatpush1.msra.mxu0 0.0
        %311 = vmatprep.subr.mxu0 0.0
        %312 = vmatpush1.msra.mxu0 0.0
        %313 = vmatprep.subr.mxu0 0.0
        %314 = vmatpush1.msra.mxu0 0.0
        %315 = vmatprep.subr.mxu0 0.0
        %316 = vmatpush1.msra.mxu0 0.0
        %317 = vmatprep.subr.mxu0 0.0
        %318 = vmatpush1.msra.mxu0 0.0
        %319 = vmatprep.subr.mxu0 0.0
        %320 = vmatpush1.msra.mxu0 0.0
        %321 = vmatprep.subr.mxu0 0.0
        %322 = vmatpush1.msra.mxu0 0.0
        %323 = vmatprep.subr.mxu0 0.0
        %324 = vmatpush1.msra.mxu0 0.0
        %325 = vmatprep.subr.mxu0 0.0
        %326 = vmatpush1.msra.mxu0 %v289
        %327 = vmatprep.subr.mxu0 0.0
        %328 = vmatpush1.msra.mxu0 %v288
        %329 = vmatprep.subr.mxu0 0.0
        %330 = vmatpush1.msra.mxu0 %v287
        %331 = vmatprep.subr.mxu0 0.0
        %332 = vmatpush1.msra.mxu0 %v286
        %333 = vmatprep.subr.mxu0 0.0
        %334 = vmatpush2.msra.mxu0 0.0
        %335 = vmatprep.subr.mxu0 0.0
        %336 = vmatpush2.msra.mxu0 0.0
        %337 = vmatprep.subr.mxu0 0.0
        %338 = vmatpush2.msra.mxu0 0.0
        %339 = vmatprep.subr.mxu0 0.0
        %340 = vmatpush2.msra.mxu0 0.0
        %341 = vmatprep.subr.mxu0 0.0
        %342 = vmatpush2.msra.mxu0 0.0
        %343 = vmatprep.subr.mxu0 0.0
        %344 = vmatpush2.msra.mxu0 0.0
        %345 = vmatprep.subr.mxu0 0.0
        %346 = vmatpush2.msra.mxu0 0.0
        %347 = vmatprep.subr.mxu0 0.0
        %348 = vmatpush2.msra.mxu0 0.0
        %349 = vmatprep.subr.mxu0 0.0
        %350 = vmatpush2.msra.mxu0 0.0
        %351 = vmatprep.subr.mxu0 0.0
        %352 = vmatpush2.msra.mxu0 0.0
        %353 = vmatprep.subr.mxu0 0.0
        %354 = vmatpush2.msra.mxu0 0.0
        %355 = vmatprep.subr.mxu0 0.0
        %356 = vmatpush2.msra.mxu0 0.0
        %357 = vmatprep.subr.mxu0 0.0
        %358 = vmatpush2.msra.mxu0 0.0
        %359 = vmatprep.subr.mxu0 0.0
        %360 = vmatpush2.msra.mxu0 0.0
        %361 = vmatprep.subr.mxu0 0.0
        %362 = vmatpush2.msra.mxu0 0.0
        %363 = vmatprep.subr.mxu0 0.0
        %364 = vmatpush2.msra.mxu0 0.0
        %365 = vmatprep.mubr.f32.mxu0 0.0
        %366 = vmatmul.mubr.f32.gmra.mxu0 %v299
        %v367 = vpop.f32.mrf.mxu0
        %v368 = vadd.f32 %v295, %v367
        %v369 = vpop.f32.mrf.mxu0
        %370 = vdwg.mxu0
        %v371 = vmul.f32 %v368, 0.5
        %v372 = vmul.f32 %v368, 0.70710677
        %v373 = verf.f32.pop %v372
        %v374 = vadd.f32 %v373, 1.0
        %v375 = vmul.f32 %v371, %v374
        %v376 = vld [vmem:[%s283] sm:$0xff]
        %v377 = vld [vmem:[%s283 + $0x8] sm:$0xff]
        %v378 = vld [vmem:[%s283 + $0x10] sm:$0xff]
        %v379 = vld [vmem:[%s283 + $0x18] sm:$0xff]
        %v380 = vld [vmem:[%s283 + $0x20] sm:$0xff]
        %v381 = vld [vmem:[%s283 + $0x28] sm:$0xff]
        %v382 = vld [vmem:[%s283 + $0x30] sm:$0xff]
        %v383 = vld [vmem:[%s283 + $0x38] sm:$0xff]
        %vm384 = vcmask 523264
        %v386 = vsel %vm384, %v375, 0
        %388 = vmatprep.subr.mxu0 0.0
        %389 = vmatpush1.msra.mxu0 0.0
        %390 = vmatprep.subr.mxu0 0.0
        %391 = vmatpush1.msra.mxu0 0.0
        %392 = vmatprep.subr.mxu0 0.0
        %393 = vmatpush1.msra.mxu0 0.0
        %394 = vmatprep.subr.mxu0 0.0
        %395 = vmatpush1.msra.mxu0 0.0
        %396 = vmatprep.subr.mxu0 0.0
        %397 = vmatpush1.msra.mxu0 0.0
        %398 = vmatprep.subr.mxu0 0.0
        %399 = vmatpush1.msra.mxu0 0.0
        %400 = vmatprep.subr.mxu0 0.0
        %401 = vmatpush1.msra.mxu0 0.0
        %402 = vmatprep.subr.mxu0 0.0
        %403 = vmatpush1.msra.mxu0 0.0
        %404 = vmatprep.subr.mxu0 0.0
        %405 = vmatpush1.msra.mxu0 %v383
        %406 = vmatprep.subr.mxu0 0.0
        %407 = vmatpush1.msra.mxu0 %v382
        %408 = vmatprep.subr.mxu0 0.0
        %409 = vmatpush1.msra.mxu0 %v381
        %410 = vmatprep.subr.mxu0 0.0
        %411 = vmatpush1.msra.mxu0 %v380
        %412 = vmatprep.subr.mxu0 0.0
        %413 = vmatpush1.msra.mxu0 %v379
        %414 = vmatprep.subr.mxu0 0.0
        %415 = vmatpush1.msra.mxu0 %v378
        %416 = vmatprep.subr.mxu0 0.0
        %417 = vmatpush1.msra.mxu0 %v377
        %418 = vmatprep.subr.mxu0 0.0
        %419 = vmatpush1.msra.mxu0 %v376
        %420 = vmatprep.subr.mxu0 0.0
        %421 = vmatpush2.msra.mxu0 0.0
        %422 = vmatprep.subr.mxu0 0.0
        %423 = vmatpush2.msra.mxu0 0.0
        %424 = vmatprep.subr.mxu0 0.0
        %425 = vmatpush2.msra.mxu0 0.0
        %426 = vmatprep.subr.mxu0 0.0
        %427 = vmatpush2.msra.mxu0 0.0
        %428 = vmatprep.subr.mxu0 0.0
        %429 = vmatpush2.msra.mxu0 0.0
        %430 = vmatprep.subr.mxu0 0.0
        %431 = vmatpush2.msra.mxu0 0.0
        %432 = vmatprep.subr.mxu0 0.0
        %433 = vmatpush2.msra.mxu0 0.0
        %434 = vmatprep.subr.mxu0 0.0
        %435 = vmatpush2.msra.mxu0 0.0
        %436 = vmatprep.subr.mxu0 0.0
        %437 = vmatpush2.msra.mxu0 0.0
        %438 = vmatprep.subr.mxu0 0.0
        %439 = vmatpush2.msra.mxu0 0.0
        %440 = vmatprep.subr.mxu0 0.0
        %441 = vmatpush2.msra.mxu0 0.0
        %442 = vmatprep.subr.mxu0 0.0
        %443 = vmatpush2.msra.mxu0 0.0
        %444 = vmatprep.subr.mxu0 0.0
        %445 = vmatpush2.msra.mxu0 0.0
        %446 = vmatprep.subr.mxu0 0.0
        %447 = vmatpush2.msra.mxu0 0.0
        %448 = vmatprep.subr.mxu0 0.0
        %449 = vmatpush2.msra.mxu0 0.0
        %450 = vmatprep.subr.mxu0 0.0
        %451 = vmatpush2.msra.mxu0 0.0
        %452 = vmatprep.mubr.f32.mxu0 0.0
        %453 = vmatmul.mubr.f32.gmra.mxu0 %v386
        %v454 = vpop.f32.mrf.mxu0
        %v455 = vadd.f32 0.0, %v454
        %v456 = vpop.f32.mrf.mxu0
        %457 = vdwg.mxu0
        %p458 = scmp.eq.s32.totalorder %s24, 0
        // Predicated region
        $region41: #{tpu_custom_call.1} parent=39 // pred_check
          %p459 = pneg %p458
        $region42: #{tpu_custom_call.1} parent=39 // pred_check_branch
          %461 = sbr.rel (%p459) target = $region44
        $region43: #{tpu_custom_call.1} parent=39 // pred_region
          %v462 = vld [vmem:[%s4] sm:$0x1]
          %v464 = vlaneseq
          %v465 = vshrl.u32 %v464, 7
          %v466 = vsub.s32 0, %v465
          %v467 = vrot.slane %v462, %v466
          %v469 = vadd.f32 %v455, %v467
          %470 = vst.msk [vmem:[#allocation2] sm:$0xff] %vm297, %v469
        $region44: #{tpu_custom_call.1} parent=39 // pred_fallthru
          _
        %p471 = scmp.ne.s32.totalorder %s24, 0
        // Predicated region
        $region45: #{tpu_custom_call.1} parent=39 // pred_check
          %p472 = pneg %p471
        $region46: #{tpu_custom_call.1} parent=39 // pred_check_branch
          %474 = sbr.rel (%p472) target = $region48
        $region47: #{tpu_custom_call.1} parent=39 // pred_region
          %v475 = vld [vmem:[#allocation2] sm:$0xff]
          %v476 = vadd.f32 %v475, %v455
          %477 = vst.msk [vmem:[#allocation2] sm:$0xff] %vm297, %v476
        $region48: #{tpu_custom_call.1} parent=39 // pred_fallthru
          _
        // Predicated region
        $region49: #{tpu_custom_call.1} parent=39 // pred_check
          %p478 = pneg %p458
        $region50: #{tpu_custom_call.1} parent=39 // pred_check_branch
          %480 = sbr.rel (%p478) target = $region52
        $region51: #{tpu_custom_call.1} parent=39 // pred_region
          %v481 = vld [vmem:[#allocation2] sm:$0xff]
          %482 = vst.msk [vmem:[%s267] sm:$0xff] %vm297, %v481
        $region52: #{tpu_custom_call.1} parent=39 // pred_fallthru
          _
        %s483 = sand.u32 %s164, 1
        %s484 = scalar_lea.sflag [#allocation4], %s483
        %s485 = sand.u32 %s164, 1
        %s486 = smul.addr %s485, 8
        %s487 = scalar_lea.vmem [#allocation3], %s486
        // Predicated region
        $region53: #{tpu_custom_call.1} parent=39 // pred_check
          %p488 = pneg %p174
        $region54: #{tpu_custom_call.1} parent=39 // pred_check_branch
          %490 = sbr.rel (%p488) target = $region56
        $region55: #{tpu_custom_call.1} parent=39 // pred_region
          %s492 = ssub.s32 128, 128
          %493 = vsyncadd %s484, %s492
          %s494 = smul.addr %s23, 128
          %s495 = scalar_lea.hbm %s5, %s494
          %s497 = sshll.u32 %s487, 4
          %s498 = int_to_ptr.vmem [resolvable:$true] %s497
          %500 = dma.vmem_to_hbm [thread:$0]  %s498, 128, %s495, %s484
        $region56: #{tpu_custom_call.1} parent=39 // pred_fallthru
          _
      $region40: #{tpu_custom_call.1} parent=5 // pred_fallthru
        _
      %p501 = scmp.le.s32.totalorder 2, %s14
      // Predicated region
      $region57: #{tpu_custom_call.1} parent=5 // pred_check
        %p502 = pneg %p501
      $region58: #{tpu_custom_call.1} parent=5 // pred_check_branch
        %504 = sbr.rel (%p502) target = $region60
      $region59: #{tpu_custom_call.1} parent=5 // pred_region
        %s505 = ssub.s32 %s14, 2
        // Predicated region
        $region61: #{tpu_custom_call.1} parent=59 // pred_check
          %p506 = pneg %p180
        $region62: #{tpu_custom_call.1} parent=59 // pred_check_branch
          %508 = sbr.rel (%p506) target = $region64
        $region63: #{tpu_custom_call.1} parent=59 // pred_region
          %s509 = sand.u32 %s165, 1
          %s510 = scalar_lea.sflag [#allocation4], %s509
          %s511 = sand.u32 %s165, 1
          %s512 = smul.addr %s511, 8
          %s513 = scalar_lea.vmem [#allocation3], %s512
          %514 = dma.done %s510, 128
        $region64: #{tpu_custom_call.1} parent=59 // pred_fallthru
          _
      $region60: #{tpu_custom_call.1} parent=5 // pred_fallthru
        _
    $region6: #{tpu_custom_call.1} parent=1 // loop_footer
      %s18 = sadd.s32 1, %s14
    $region7: #{tpu_custom_call.1} parent=1 // loop_footer_branch
      %13 = sbr.rel target = $region3
    $region8: #{tpu_custom_call.1} parent=1 // loop_exit
      _
    %515 = vsyncpa [#allocation4], 1
    %s516 = scalar_lea.sflag [#allocation4], 1
    %517 = vsyncpa %s516, 1

</llo_original>
